<compile_context>
chip_gen: v7x
topology: tpu7x:2x2x1
jax: 0.10.0
libtpu: 0.0.40
codegen_flags: <defaults>
</compile_context>

<pallas_src>
import functools

import jax
import jax.numpy as jnp
from jax.experimental import pallas as pl
from jax.experimental.pallas import tpu as pltpu

_LANE = 128


def _dice_partials_kernel(x_ref, t_ref, out_ref, *, num_classes, rows_total,
                          tile_rows, group_rows, tiles_per_shard, need_mask):
    """Per-(batch, shard) per-class vector partial counts.

    x_ref  : (C, tr, 128)       logits block (native dtype)
    t_ref  : (tr, 128)          target block (native integer dtype)
    out_ref: (2*(C-1), g, 128)  int32; rows [0, C-1) = intersection partials,
                                rows [C-1, 2*(C-1)) = target-count partials.
                                Resident across the last ("arbitrary") grid axis.
    """
    j = pl.program_id(2)
    C = num_classes
    g = group_rows

    @pl.when(j == 0)
    def _():
        out_ref[...] = jnp.zeros_like(out_ref)

    t = t_ref[...].astype(jnp.int32)                 # one widen per element

    # ---- fused argmax over channels, native dtype, strict '>' => first max ----
    best = x_ref[0]
    pred = jnp.zeros(best.shape, dtype=jnp.int32)
    for c in range(1, C):                            # C is small & static
        xc = x_ref[c]
        take = xc > best
        pred = jnp.where(take, jnp.int32(c), pred)
        best = jnp.where(take, xc, best)
    eq = pred == t                                   # hoisted: one compare/tile

    if need_mask:
        # Ragged last tile (and clamped duplicate tiles): mask rows >= rows_total.
        logical_tile = pl.program_id(1) * tiles_per_shard + j
        row0 = logical_tile * tile_rows
        rows = row0 + jax.lax.broadcasted_iota(jnp.int32, t.shape, 0)
        valid = rows < rows_total

    # ---- per-class partial counts: pure VPU adds into the resident output ----
    for c in range(1, C):
        tc = t == c
        if need_mask:
            tc = tc & valid
        tcnt = tc.astype(jnp.int32)                  # (tr, 128)
        icnt = jnp.where(eq, tcnt, 0)                # tc & eq, as int32
        out_ref[c - 1] += icnt.reshape(-1, g, _LANE).sum(axis=0)
        out_ref[(C - 1) + (c - 1)] += tcnt.reshape(-1, g, _LANE).sum(axis=0)


def _round_up(v, m):
    return -(-v // m) * m


def dice_loss(logits_nchw, target_nhw, eps=1e-8, *, n_shards=1,
              block_bytes=4 * 1024 * 1024, max_tile_rows=2048):
    """Generalised Dice loss matching the PyTorch reference.

    logits_nchw: (B, C, H, W) float logits (any float dtype; compared natively)
    target_nhw : (B, H, W)    integer class ids (kept in native dtype)
    """
    B, C, H, W = logits_nchw.shape
    assert C >= 2, "DiceLoss needs at least 2 classes (background + 1)"
    N = H * W

    if not jnp.issubdtype(target_nhw.dtype, jnp.integer):
        target_nhw = target_nhw.astype(jnp.int32)
    x_item = jnp.dtype(logits_nchw.dtype).itemsize
    t_item = jnp.dtype(target_nhw.dtype).itemsize

    # ---- spatial axis -> (rows, 128) lanes (free reshape when N % 128 == 0) ----
    Rn = pl.cdiv(N, _LANE)
    x = logits_nchw.reshape(B, C, N)
    t = target_nhw.reshape(B, N)
    if Rn * _LANE != N:
        # TODO(synk): lane-ragged spatial sizes still pay one HBM pad copy; the
        # common trigger (row raggedness) is masked in-kernel instead of padded.
        x = jnp.pad(x, ((0, 0), (0, 0), (0, Rn * _LANE - N)))
        t = jnp.pad(t, ((0, 0), (0, Rn * _LANE - N)))   # class 0: never counted
    x = x.reshape(B, C, Rn, _LANE)
    t = t.reshape(B, Rn, _LANE)

    # ---- tiling: dtype-correct sublane multiple, ~block_bytes logits / step ----
    sub = max(8 * 4 // x_item, 8 * 4 // t_item)          # 8/16/32 for 32/16/8-bit
    shards_req = max(int(n_shards), 1)
    tr_cap = max(sub, (block_bytes // (C * _LANE * x_item)) // sub * sub)
    tr_max = max(sub, int(max_tile_rows) // sub * sub)
    tr_need = _round_up(pl.cdiv(Rn, shards_req), sub)
    if Rn <= sub:
        tr = Rn                                          # tiny full-dim block
    else:
        tr = min(tr_cap, tr_need, tr_max, Rn // sub * sub)
    T = pl.cdiv(Rn, tr)                                  # total row tiles
    S = min(shards_req, T)                               # parallel shards
    J = pl.cdiv(T, S)                                    # tiles per shard
    need_mask = (Rn % tr != 0) or (S * J != T)
    g = 8 if tr % 8 == 0 else tr                         # accumulator sublanes

    if S * J == T:
        row_block = lambda s, j: s * J + j
    else:
        # Duplicate tiles get clamped to a valid block; their rows are masked.
        row_block = lambda s, j: jnp.minimum(s * J + j, T - 1)

    kernel = functools.partial(
        _dice_partials_kernel, num_classes=C, rows_total=Rn, tile_rows=tr,
        group_rows=g, tiles_per_shard=J, need_mask=need_mask)

    partials = pl.pallas_call(
        kernel,
        out_shape=jax.ShapeDtypeStruct((B, S, 2 * (C - 1), g, _LANE), jnp.int32),
        grid_spec=pltpu.PrefetchScalarGridSpec(
            num_scalar_prefetch=0,
            grid=(B, S, J),
            in_specs=[
                pl.BlockSpec((None, C, tr, _LANE),
                             lambda b, s, j: (b, 0, row_block(s, j), 0)),
                pl.BlockSpec((None, tr, _LANE),
                             lambda b, s, j: (b, row_block(s, j), 0)),
            ],
            out_specs=pl.BlockSpec((None, None, 2 * (C - 1), g, _LANE),
                                   lambda b, s, j: (b, s, 0, 0, 0)),
        ),
        compiler_params=pltpu.CompilerParams(
            dimension_semantics=("parallel", "parallel", "arbitrary"),
            vmem_limit_bytes=40 * 1024 * 1024),
    )(x, t)

    # ---- finish: one tiny cross-lane reduction + trivial dice arithmetic ----
    # (exact int32 counts; overflows only if one class exceeds ~2.1e9 pixels)
    counts = jnp.sum(partials, axis=(0, 1, 3, 4)).astype(jnp.float32)
    inter = counts[:C - 1]
    tsum = counts[C - 1:]
    dice = (2.0 * inter + eps) / (inter + tsum + eps)
    loss = 1.0 - jnp.mean(dice)
    return loss.reshape(1).astype(jnp.float32)


def _dice_loss_ref(logits_nchw, target_nhw, eps=1e-8):
    """Pure-JAX reference mirroring the PyTorch module."""
    B, C, H, W = logits_nchw.shape
    pred = jnp.argmax(logits_nchw, axis=1).reshape(B, -1)
    tgt = target_nhw.reshape(B, -1)
    dices = []
    for c in range(1, C):
        inter = jnp.sum((tgt == c) & (pred == c)).astype(jnp.float32)
        tsum = jnp.sum(tgt == c).astype(jnp.float32)
        dices.append((2.0 * inter + eps) / (inter + tsum + eps))
    return (1.0 - jnp.mean(jnp.stack(dices))).reshape(1)


if __name__ == "__main__":
    key = jax.random.PRNGKey(0)
    k_logits, k_target = jax.random.split(key)

    B, C, H, W = 2, 4, 16, 16
    logits = jax.random.normal(k_logits, (B, C, H, W), dtype=jnp.float32)
    target = jax.random.randint(k_target, (B, H, W), minval=0, maxval=C,
                                dtype=jnp.int32)

    loss = jax.block_until_ready(dice_loss(logits, target))
    ref = jax.block_until_ready(_dice_loss_ref(logits, target))

    assert loss.shape == (1,) and loss.dtype == jnp.float32
    assert jnp.allclose(loss, ref, atol=1e-6, rtol=1e-6), (loss, ref)
    print("KERNEL_OK")
</pallas_src>

<mosaic_0001>
module attributes {stable_mosaic.version = 11 : i64} {
  func.func @_dice_partials_kernel(%arg0: i32, %arg1: i32, %arg2: i32, %arg3: memref<1x4x2x128xf32, #tpu.memory_space<vmem>>, %arg4: memref<1x2x128xi32, #tpu.memory_space<vmem>>, %arg5: memref<1x1x6x2x128xi32, #tpu.memory_space<vmem>>) attributes {dimension_semantics = [#tpu.dimension_semantics<parallel>, #tpu.dimension_semantics<parallel>, #tpu.dimension_semantics<arbitrary>], iteration_bounds = array<i64: 2, 1, 1>, scalar_prefetch = 0 : i64, scratch_operands = 0 : i64, tpu.core_type = #tpu.core_type<tc>, window_params = [{transform_indices = @transform_0, window_bounds = array<i64: 1, 4, 2, 128>}, {transform_indices = @transform_1, window_bounds = array<i64: 1, 2, 128>}, {transform_indices = @transform_2, window_bounds = array<i64: 1, 1, 6, 2, 128>}]} {
    %c0_i32 = arith.constant 0 : i32
    %0 = arith.cmpi eq, %arg2, %c0_i32 : i32
    %1 = arith.extui %0 : i1 to i32
    %c0_i32_0 = arith.constant 0 : i32
    %2 = arith.cmpi ne, %1, %c0_i32_0 : i32
    scf.if %2 {
      %c0_i32_86 = arith.constant 0 : i32
      %89 = vector.broadcast %c0_i32_86 : i32 to vector<6x2x128xi32>
      %c0_87 = arith.constant 0 : index
      %c0_88 = arith.constant 0 : index
      %c0_89 = arith.constant 0 : index
      %c0_90 = arith.constant 0 : index
      %c0_91 = arith.constant 0 : index
      %90 = vector.load %arg5[%c0_87, %c0_88, %c0_89, %c0_90, %c0_91] : memref<1x1x6x2x128xi32, #tpu.memory_space<vmem>>, vector<1x1x6x2x128xi32>
      %91 = vector.shape_cast %90 : vector<1x1x6x2x128xi32> to vector<6x2x128xi32>
      %92 = vector.shape_cast %89 : vector<6x2x128xi32> to vector<1x1x6x2x128xi32>
      tpu.vector_store %arg5[%c0_87, %c0_88, %c0_89, %c0_90, %c0_91], %92 {strides = array<i32>} : memref<1x1x6x2x128xi32, #tpu.memory_space<vmem>>, vector<1x1x6x2x128xi32>,
    } else {
    }
    %c0 = arith.constant 0 : index
    %c0_1 = arith.constant 0 : index
    %c0_2 = arith.constant 0 : index
    %3 = vector.load %arg4[%c0, %c0_1, %c0_2] : memref<1x2x128xi32, #tpu.memory_space<vmem>>, vector<1x2x128xi32>
    %4 = vector.shape_cast %3 : vector<1x2x128xi32> to vector<2x128xi32>
    %c0_3 = arith.constant 0 : index
    %c0_4 = arith.constant 0 : index
    %c0_5 = arith.constant 0 : index
    %c0_6 = arith.constant 0 : index
    %5 = vector.load %arg3[%c0_3, %c0_4, %c0_5, %c0_6] : memref<1x4x2x128xf32, #tpu.memory_space<vmem>>, vector<1x1x2x128xf32>
    %6 = vector.shape_cast %5 : vector<1x1x2x128xf32> to vector<2x128xf32>
    %c0_i32_7 = arith.constant 0 : i32
    %7 = vector.broadcast %c0_i32_7 : i32 to vector<2x128xi32>
    %c0_8 = arith.constant 0 : index
    %c1 = arith.constant 1 : index
    %c0_9 = arith.constant 0 : index
    %c0_10 = arith.constant 0 : index
    %8 = vector.load %arg3[%c0_8, %c1, %c0_9, %c0_10] : memref<1x4x2x128xf32, #tpu.memory_space<vmem>>, vector<1x1x2x128xf32>
    %9 = vector.shape_cast %8 : vector<1x1x2x128xf32> to vector<2x128xf32>
    %10 = arith.cmpf ogt, %9, %6 : vector<2x128xf32>
    %c1_i32 = arith.constant 1 : i32
    %11 = vector.broadcast %c1_i32 : i32 to vector<2x128xi32>
    %12 = arith.select %10, %11, %7 : vector<2x128xi1>, vector<2x128xi32>
    %13 = arith.select %10, %9, %6 : vector<2x128xi1>, vector<2x128xf32>
    %c0_11 = arith.constant 0 : index
    %c2 = arith.constant 2 : index
    %c0_12 = arith.constant 0 : index
    %c0_13 = arith.constant 0 : index
    %14 = vector.load %arg3[%c0_11, %c2, %c0_12, %c0_13] : memref<1x4x2x128xf32, #tpu.memory_space<vmem>>, vector<1x1x2x128xf32>
    %15 = vector.shape_cast %14 : vector<1x1x2x128xf32> to vector<2x128xf32>
    %16 = arith.cmpf ogt, %15, %13 : vector<2x128xf32>
    %c2_i32 = arith.constant 2 : i32
    %17 = vector.broadcast %c2_i32 : i32 to vector<2x128xi32>
    %18 = arith.select %16, %17, %12 : vector<2x128xi1>, vector<2x128xi32>
    %19 = arith.select %16, %15, %13 : vector<2x128xi1>, vector<2x128xf32>
    %c0_14 = arith.constant 0 : index
    %c3 = arith.constant 3 : index
    %c0_15 = arith.constant 0 : index
    %c0_16 = arith.constant 0 : index
    %20 = vector.load %arg3[%c0_14, %c3, %c0_15, %c0_16] : memref<1x4x2x128xf32, #tpu.memory_space<vmem>>, vector<1x1x2x128xf32>
    %21 = vector.shape_cast %20 : vector<1x1x2x128xf32> to vector<2x128xf32>
    %22 = arith.cmpf ogt, %21, %19 : vector<2x128xf32>
    %c3_i32 = arith.constant 3 : i32
    %23 = vector.broadcast %c3_i32 : i32 to vector<2x128xi32>
    %24 = arith.select %22, %23, %18 : vector<2x128xi1>, vector<2x128xi32>
    %25 = arith.cmpi eq, %24, %4 : vector<2x128xi32>
    %c1_i32_17 = arith.constant 1 : i32
    %26 = vector.broadcast %c1_i32_17 : i32 to vector<2x128xi32>
    %27 = arith.cmpi eq, %4, %26 : vector<2x128xi32>
    %28 = arith.extui %27 : vector<2x128xi1> to vector<2x128xi32>
    %c0_i32_18 = arith.constant 0 : i32
    %29 = vector.broadcast %c0_i32_18 : i32 to vector<2x128xi32>
    %30 = arith.select %25, %28, %29 : vector<2x128xi1>, vector<2x128xi32>
    %c0_19 = arith.constant 0 : index
    %c0_20 = arith.constant 0 : index
    %c0_21 = arith.constant 0 : index
    %c0_22 = arith.constant 0 : index
    %c0_23 = arith.constant 0 : index
    %31 = vector.load %arg5[%c0_19, %c0_20, %c0_21, %c0_22, %c0_23] : memref<1x1x6x2x128xi32, #tpu.memory_space<vmem>>, vector<1x1x1x2x128xi32>
    %32 = vector.shape_cast %31 : vector<1x1x1x2x128xi32> to vector<2x128xi32>
    %33 = vector.shape_cast %30 : vector<2x128xi32> to vector<1x2x128xi32>
    %cst = arith.constant dense<0> : vector<2x128xi32>
    %34 = vector.multi_reduction <add>, %33, %cst [0] : vector<1x2x128xi32> to vector<2x128xi32>
    %35 = arith.addi %32, %34 : vector<2x128xi32>
    %c0_24 = arith.constant 0 : index
    %c0_25 = arith.constant 0 : index
    %c0_26 = arith.constant 0 : index
    %c0_27 = arith.constant 0 : index
    %c0_28 = arith.constant 0 : index
    %36 = vector.load %arg5[%c0_24, %c0_25, %c0_26, %c0_27, %c0_28] : memref<1x1x6x2x128xi32, #tpu.memory_space<vmem>>, vector<1x1x1x2x128xi32>
    %37 = vector.shape_cast %36 : vector<1x1x1x2x128xi32> to vector<2x128xi32>
    %38 = vector.shape_cast %35 : vector<2x128xi32> to vector<1x1x1x2x128xi32>
    tpu.vector_store %arg5[%c0_24, %c0_25, %c0_26, %c0_27, %c0_28], %38 {strides = array<i32>} : memref<1x1x6x2x128xi32, #tpu.memory_space<vmem>>, vector<1x1x1x2x128xi32>,
    %c0_29 = arith.constant 0 : index
    %c0_30 = arith.constant 0 : index
    %c3_31 = arith.constant 3 : index
    %c0_32 = arith.constant 0 : index
    %c0_33 = arith.constant 0 : index
    %39 = vector.load %arg5[%c0_29, %c0_30, %c3_31, %c0_32, %c0_33] : memref<1x1x6x2x128xi32, #tpu.memory_space<vmem>>, vector<1x1x1x2x128xi32>
    %40 = vector.shape_cast %39 : vector<1x1x1x2x128xi32> to vector<2x128xi32>
    %41 = vector.shape_cast %28 : vector<2x128xi32> to vector<1x2x128xi32>
    %cst_34 = arith.constant dense<0> : vector<2x128xi32>
    %42 = vector.multi_reduction <add>, %41, %cst_34 [0] : vector<1x2x128xi32> to vector<2x128xi32>
    %43 = arith.addi %40, %42 : vector<2x128xi32>
    %c0_35 = arith.constant 0 : index
    %c0_36 = arith.constant 0 : index
    %c3_37 = arith.constant 3 : index
    %c0_38 = arith.constant 0 : index
    %c0_39 = arith.constant 0 : index
    %44 = vector.load %arg5[%c0_35, %c0_36, %c3_37, %c0_38, %c0_39] : memref<1x1x6x2x128xi32, #tpu.memory_space<vmem>>, vector<1x1x1x2x128xi32>
    %45 = vector.shape_cast %44 : vector<1x1x1x2x128xi32> to vector<2x128xi32>
    %46 = vector.shape_cast %43 : vector<2x128xi32> to vector<1x1x1x2x128xi32>
    tpu.vector_store %arg5[%c0_35, %c0_36, %c3_37, %c0_38, %c0_39], %46 {strides = array<i32>} : memref<1x1x6x2x128xi32, #tpu.memory_space<vmem>>, vector<1x1x1x2x128xi32>,
    %c2_i32_40 = arith.constant 2 : i32
    %47 = vector.broadcast %c2_i32_40 : i32 to vector<2x128xi32>
    %48 = arith.cmpi eq, %4, %47 : vector<2x128xi32>
    %49 = arith.extui %48 : vector<2x128xi1> to vector<2x128xi32>
    %c0_i32_41 = arith.constant 0 : i32
    %50 = vector.broadcast %c0_i32_41 : i32 to vector<2x128xi32>
    %51 = arith.select %25, %49, %50 : vector<2x128xi1>, vector<2x128xi32>
    %c0_42 = arith.constant 0 : index
    %c0_43 = arith.constant 0 : index
    %c1_44 = arith.constant 1 : index
    %c0_45 = arith.constant 0 : index
    %c0_46 = arith.constant 0 : index
    %52 = vector.load %arg5[%c0_42, %c0_43, %c1_44, %c0_45, %c0_46] : memref<1x1x6x2x128xi32, #tpu.memory_space<vmem>>, vector<1x1x1x2x128xi32>
    %53 = vector.shape_cast %52 : vector<1x1x1x2x128xi32> to vector<2x128xi32>
    %54 = vector.shape_cast %51 : vector<2x128xi32> to vector<1x2x128xi32>
    %cst_47 = arith.constant dense<0> : vector<2x128xi32>
    %55 = vector.multi_reduction <add>, %54, %cst_47 [0] : vector<1x2x128xi32> to vector<2x128xi32>
    %56 = arith.addi %53, %55 : vector<2x128xi32>
    %c0_48 = arith.constant 0 : index
    %c0_49 = arith.constant 0 : index
    %c1_50 = arith.constant 1 : index
    %c0_51 = arith.constant 0 : index
    %c0_52 = arith.constant 0 : index
    %57 = vector.load %arg5[%c0_48, %c0_49, %c1_50, %c0_51, %c0_52] : memref<1x1x6x2x128xi32, #tpu.memory_space<vmem>>, vector<1x1x1x2x128xi32>
    %58 = vector.shape_cast %57 : vector<1x1x1x2x128xi32> to vector<2x128xi32>
    %59 = vector.shape_cast %56 : vector<2x128xi32> to vector<1x1x1x2x128xi32>
    tpu.vector_store %arg5[%c0_48, %c0_49, %c1_50, %c0_51, %c0_52], %59 {strides = array<i32>} : memref<1x1x6x2x128xi32, #tpu.memory_space<vmem>>, vector<1x1x1x2x128xi32>,
    %c0_53 = arith.constant 0 : index
    %c0_54 = arith.constant 0 : index
    %c4 = arith.constant 4 : index
    %c0_55 = arith.constant 0 : index
    %c0_56 = arith.constant 0 : index
    %60 = vector.load %arg5[%c0_53, %c0_54, %c4, %c0_55, %c0_56] : memref<1x1x6x2x128xi32, #tpu.memory_space<vmem>>, vector<1x1x1x2x128xi32>
    %61 = vector.shape_cast %60 : vector<1x1x1x2x128xi32> to vector<2x128xi32>
    %62 = vector.shape_cast %49 : vector<2x128xi32> to vector<1x2x128xi32>
    %cst_57 = arith.constant dense<0> : vector<2x128xi32>
    %63 = vector.multi_reduction <add>, %62, %cst_57 [0] : vector<1x2x128xi32> to vector<2x128xi32>
    %64 = arith.addi %61, %63 : vector<2x128xi32>
    %c0_58 = arith.constant 0 : index
    %c0_59 = arith.constant 0 : index
    %c4_60 = arith.constant 4 : index
    %c0_61 = arith.constant 0 : index
    %c0_62 = arith.constant 0 : index
    %65 = vector.load %arg5[%c0_58, %c0_59, %c4_60, %c0_61, %c0_62] : memref<1x1x6x2x128xi32, #tpu.memory_space<vmem>>, vector<1x1x1x2x128xi32>
    %66 = vector.shape_cast %65 : vector<1x1x1x2x128xi32> to vector<2x128xi32>
    %67 = vector.shape_cast %64 : vector<2x128xi32> to vector<1x1x1x2x128xi32>
    tpu.vector_store %arg5[%c0_58, %c0_59, %c4_60, %c0_61, %c0_62], %67 {strides = array<i32>} : memref<1x1x6x2x128xi32, #tpu.memory_space<vmem>>, vector<1x1x1x2x128xi32>,
    %c3_i32_63 = arith.constant 3 : i32
    %68 = vector.broadcast %c3_i32_63 : i32 to vector<2x128xi32>
    %69 = arith.cmpi eq, %4, %68 : vector<2x128xi32>
    %70 = arith.extui %69 : vector<2x128xi1> to vector<2x128xi32>
    %c0_i32_64 = arith.constant 0 : i32
    %71 = vector.broadcast %c0_i32_64 : i32 to vector<2x128xi32>
    %72 = arith.select %25, %70, %71 : vector<2x128xi1>, vector<2x128xi32>
    %c0_65 = arith.constant 0 : index
    %c0_66 = arith.constant 0 : index
    %c2_67 = arith.constant 2 : index
    %c0_68 = arith.constant 0 : index
    %c0_69 = arith.constant 0 : index
    %73 = vector.load %arg5[%c0_65, %c0_66, %c2_67, %c0_68, %c0_69] : memref<1x1x6x2x128xi32, #tpu.memory_space<vmem>>, vector<1x1x1x2x128xi32>
    %74 = vector.shape_cast %73 : vector<1x1x1x2x128xi32> to vector<2x128xi32>
    %75 = vector.shape_cast %72 : vector<2x128xi32> to vector<1x2x128xi32>
    %cst_70 = arith.constant dense<0> : vector<2x128xi32>
    %76 = vector.multi_reduction <add>, %75, %cst_70 [0] : vector<1x2x128xi32> to vector<2x128xi32>
    %77 = arith.addi %74, %76 : vector<2x128xi32>
    %c0_71 = arith.constant 0 : index
    %c0_72 = arith.constant 0 : index
    %c2_73 = arith.constant 2 : index
    %c0_74 = arith.constant 0 : index
    %c0_75 = arith.constant 0 : index
    %78 = vector.load %arg5[%c0_71, %c0_72, %c2_73, %c0_74, %c0_75] : memref<1x1x6x2x128xi32, #tpu.memory_space<vmem>>, vector<1x1x1x2x128xi32>
    %79 = vector.shape_cast %78 : vector<1x1x1x2x128xi32> to vector<2x128xi32>
    %80 = vector.shape_cast %77 : vector<2x128xi32> to vector<1x1x1x2x128xi32>
    tpu.vector_store %arg5[%c0_71, %c0_72, %c2_73, %c0_74, %c0_75], %80 {strides = array<i32>} : memref<1x1x6x2x128xi32, #tpu.memory_space<vmem>>, vector<1x1x1x2x128xi32>,
    %c0_76 = arith.constant 0 : index
    %c0_77 = arith.constant 0 : index
    %c5 = arith.constant 5 : index
    %c0_78 = arith.constant 0 : index
    %c0_79 = arith.constant 0 : index
    %81 = vector.load %arg5[%c0_76, %c0_77, %c5, %c0_78, %c0_79] : memref<1x1x6x2x128xi32, #tpu.memory_space<vmem>>, vector<1x1x1x2x128xi32>
    %82 = vector.shape_cast %81 : vector<1x1x1x2x128xi32> to vector<2x128xi32>
    %83 = vector.shape_cast %70 : vector<2x128xi32> to vector<1x2x128xi32>
    %cst_80 = arith.constant dense<0> : vector<2x128xi32>
    %84 = vector.multi_reduction <add>, %83, %cst_80 [0] : vector<1x2x128xi32> to vector<2x128xi32>
    %85 = arith.addi %82, %84 : vector<2x128xi32>
    %c0_81 = arith.constant 0 : index
    %c0_82 = arith.constant 0 : index
    %c5_83 = arith.constant 5 : index
    %c0_84 = arith.constant 0 : index
    %c0_85 = arith.constant 0 : index
    %86 = vector.load %arg5[%c0_81, %c0_82, %c5_83, %c0_84, %c0_85] : memref<1x1x6x2x128xi32, #tpu.memory_space<vmem>>, vector<1x1x1x2x128xi32>
    %87 = vector.shape_cast %86 : vector<1x1x1x2x128xi32> to vector<2x128xi32>
    %88 = vector.shape_cast %85 : vector<2x128xi32> to vector<1x1x1x2x128xi32>
    tpu.vector_store %arg5[%c0_81, %c0_82, %c5_83, %c0_84, %c0_85], %88 {strides = array<i32>} : memref<1x1x6x2x128xi32, #tpu.memory_space<vmem>>, vector<1x1x1x2x128xi32>,
    return
  }
  func.func @transform_0(%arg0: i32, %arg1: i32, %arg2: i32) -> (i32, i32, i32, i32) {
    %c1_i32 = arith.constant 1 : i32
    %0 = arith.muli %arg1, %c1_i32 : i32
    %1 = arith.addi %0, %arg2 : i32
    %c0_i32 = arith.constant 0 : i32
    %c0_i32_0 = arith.constant 0 : i32
    %c0_i32_1 = arith.constant 0 : i32
    return %arg0, %c0_i32, %1, %c0_i32_0 : i32, i32, i32, i32
  }
  func.func @transform_1(%arg0: i32, %arg1: i32, %arg2: i32) -> (i32, i32, i32) {
    %c1_i32 = arith.constant 1 : i32
    %0 = arith.muli %arg1, %c1_i32 : i32
    %1 = arith.addi %0, %arg2 : i32
    %c0_i32 = arith.constant 0 : i32
    %c0_i32_0 = arith.constant 0 : i32
    return %arg0, %1, %c0_i32 : i32, i32, i32
  }
  func.func @transform_2(%arg0: i32, %arg1: i32, %arg2: i32) -> (i32, i32, i32, i32, i32) {
    %c0_i32 = arith.constant 0 : i32
    %c0_i32_0 = arith.constant 0 : i32
    %c0_i32_1 = arith.constant 0 : i32
    %c0_i32_2 = arith.constant 0 : i32
    return %arg0, %arg1, %c0_i32, %c0_i32_0, %c0_i32_1 : i32, i32, i32, i32, i32
  }
}

</mosaic_0001>

<llo_original>
// kernel: tpu_custom_call.1
$region0: #{tpu_custom_call.1}
  #allocation0 [shape = 'u32[]', space=smem, size = 0x4, offset = 0x4, fixed_abs, tag = 'smem constant byte address 0x4 - core index']
  #allocation1 [shape = 'u32[144,128]{1,0:T(1,128)}', space=vmem, size = 0x12000, scoped, tag = 'internal scratch']
  %s0 = inlined_call_operand.hbm [shape: f32[2,4,2,128], index: 0, kind: input, shape index: {}]
  %s1 = inlined_call_operand.hbm [shape: s32[2,2,128], index: 1, kind: input, shape index: {}]
  %s2 = inlined_call_operand.hbm [shape: s32[2,1,6,2,128], index: 2, kind: output, shape index: {}]
  %s3 = sld [smem:[#allocation0]]
  $region53: #{tpu_custom_call.1} parent=0
    _
  %s5 = ssub.s32 1, %s3
  %s6 = scalar_select 0, %s5, %s3
  $region1: #{tpu_custom_call.1} parent=0
    #allocation2 [shape = 'u8[8192]{0}', space=vmem, size = 0x2000, scoped, tag = 'input window, operand 0']
    #allocation3 [shape = 's32[2]{0}', space=sflag, size = 0x8, scoped, tag = 'scoped memory for tpu_custom_call.1']
    #allocation4 [shape = 's32[2]{0}', space=sflag, size = 0x8, scoped, tag = 'scoped memory for tpu_custom_call.1']
    #allocation5 [shape = 'u8[2048]{0}', space=vmem, size = 0x800, scoped, tag = 'input window, operand 1']
    #allocation6 [shape = 's32[2]{0}', space=sflag, size = 0x8, scoped, tag = 'scoped memory for tpu_custom_call.1']
    #allocation7 [shape = 'u8[12288]{0}', space=vmem, size = 0x3000, scoped, tag = 'output window, operand 0']
    %7 = vsyncpa [#allocation3], 0
    %s8 = scalar_lea.sflag [#allocation3], 1
    %9 = vsyncpa %s8, 0
    %10 = vsyncpa [#allocation6], 0
    %s11 = scalar_lea.sflag [#allocation6], 1
    %12 = vsyncpa %s11, 0
    %13 = vsyncpa [#allocation4], 0
    %s14 = scalar_lea.sflag [#allocation4], 1
    %15 = vsyncpa %s14, 0
    loop: start=0, step=1, limit=4
    $region2: #{tpu_custom_call.1} parent=1 // loop_pre_header
      _
    $region3: #{tpu_custom_call.1} parent=1 // loop_header
      %s17 = sphi 0, %s21
      %p18 = scmp.ge.s32.totalorder %s17, 4
      %s24 = sphi 0, %s43
      %s25 = sphi 0, %s39
      %s26 = sphi 0, %s35
      %s27 = sphi 0, %s24
      %s28 = sphi 0, %s25
      %s29 = sphi 0, %s26
      %s30 = sphi 0, %s27
      %s31 = sphi 0, %s28
      %s32 = sphi 0, %s29
      %s50 = sphi 0, %s52
      %s53 = sphi 0, %s50
      %s54 = sphi 0, %s53
      %s70 = sphi 0, %s54
      %s80 = sphi 0, %s82
      %s83 = sphi 0, %s80
      %s84 = sphi 0, %s83
      %s100 = sphi 0, %s84
      %s108 = sphi 0, %s110
      %s111 = sphi 0, %s108
      %s112 = sphi 0, %s111
      %s128 = sphi 0, %s112
    $region4: #{tpu_custom_call.1} parent=1 // loop_header_branch
      %20 = sbr.rel (%p18) target = $region8
    $region5: #{tpu_custom_call.1} parent=1 // loop_body
      %s22 = ssub.s32 %s17, 1
      %s23 = ssub.s32 %s17, 2
      %s33 = sadd.s32 1, %s26
      %p34 = scmp.ge.s32.totalorder %s33, 1
      %s35 = scalar_select %p34, 0, %s33
      %s36 = sadd.s32 1, %s25
      %s37 = scalar_select %p34, %s36, %s25
      %p38 = scmp.ge.s32.totalorder %s37, 1
      %s39 = scalar_select %p38, 0, %s37
      %s40 = sadd.s32 1, %s24
      %s41 = scalar_select %p38, %s40, %s24
      %p42 = scmp.ge.s32.totalorder %s41, 2
      %s43 = scalar_select %p42, 0, %s41
      %s44 = sadd.s32 %s25, %s26
      %s45 = sadd.s32 %s39, %s35
      %s46 = ssub.s32 %s24, %s43
      %s47 = ssub.s32 %s44, %s45
      %s48 = sor.u32 %s46, %s47
      %p49 = scmp.eq.s32.totalorder %s48, 0
      %s51 = sadd.s32 %s50, 1
      %s52 = scalar_select %p49, %s50, %s51
      %p55 = pneg %p49
      %p56 = scmp.eq.s32.totalorder %s17, 1
      %p57 = por %p55, %p56
      %p58 = scmp.ne.s32.totalorder %s50, %s53
      %p59 = scmp.eq.s32.totalorder %s17, 0
      %p60 = por %p58, %p59
      %p61 = scmp.ne.s32.totalorder %s50, %s53
      %p62 = scmp.eq.s32.totalorder %s22, 1
      %p63 = por %p61, %p62
      %p64 = scmp.ne.s32.totalorder %s53, %s54
      %p65 = scmp.eq.s32.totalorder %s22, 0
      %p66 = por %p64, %p65
      %p67 = scmp.ne.s32.totalorder %s53, %s54
      %p68 = scmp.eq.s32.totalorder %s23, 1
      %p69 = por %p67, %p68
      %p71 = scmp.ne.s32.totalorder %s54, %s70
      %p72 = scmp.eq.s32.totalorder %s23, 0
      %p73 = por %p71, %p72
      %s74 = sadd.s32 %s25, %s26
      %s75 = sadd.s32 %s39, %s35
      %s76 = ssub.s32 %s24, %s43
      %s77 = ssub.s32 %s74, %s75
      %s78 = sor.u32 %s76, %s77
      %p79 = scmp.eq.s32.totalorder %s78, 0
      %s81 = sadd.s32 %s80, 1
      %s82 = scalar_select %p79, %s80, %s81
      %p85 = pneg %p79
      %p86 = scmp.eq.s32.totalorder %s17, 1
      %p87 = por %p85, %p86
      %p88 = scmp.ne.s32.totalorder %s80, %s83
      %p89 = scmp.eq.s32.totalorder %s17, 0
      %p90 = por %p88, %p89
      %p91 = scmp.ne.s32.totalorder %s80, %s83
      %p92 = scmp.eq.s32.totalorder %s22, 1
      %p93 = por %p91, %p92
      %p94 = scmp.ne.s32.totalorder %s83, %s84
      %p95 = scmp.eq.s32.totalorder %s22, 0
      %p96 = por %p94, %p95
      %p97 = scmp.ne.s32.totalorder %s83, %s84
      %p98 = scmp.eq.s32.totalorder %s23, 1
      %p99 = por %p97, %p98
      %p101 = scmp.ne.s32.totalorder %s84, %s100
      %p102 = scmp.eq.s32.totalorder %s23, 0
      %p103 = por %p101, %p102
      %s104 = ssub.s32 %s24, %s43
      %s105 = ssub.s32 %s25, %s39
      %s106 = sor.u32 %s104, %s105
      %p107 = scmp.eq.s32.totalorder %s106, 0
      %s109 = sadd.s32 %s108, 1
      %s110 = scalar_select %p107, %s108, %s109
      %p113 = pneg %p107
      %p114 = scmp.eq.s32.totalorder %s17, 1
      %p115 = por %p113, %p114
      %p116 = scmp.ne.s32.totalorder %s108, %s111
      %p117 = scmp.eq.s32.totalorder %s17, 0
      %p118 = por %p116, %p117
      %p119 = scmp.ne.s32.totalorder %s108, %s111
      %p120 = scmp.eq.s32.totalorder %s22, 1
      %p121 = por %p119, %p120
      %p122 = scmp.ne.s32.totalorder %s111, %s112
      %p123 = scmp.eq.s32.totalorder %s22, 0
      %p124 = por %p122, %p123
      %p125 = scmp.ne.s32.totalorder %s111, %s112
      %p126 = scmp.eq.s32.totalorder %s23, 1
      %p127 = por %p125, %p126
      %p129 = scmp.ne.s32.totalorder %s112, %s128
      %p130 = scmp.eq.s32.totalorder %s23, 0
      %p131 = por %p129, %p130
      %p132 = scmp.le.s32.totalorder 1, %s17
      %p133 = scmp.lt.s32.totalorder %s17, 3
      %p134 = pnand %p132, %p133
      %p135 = pneg %p134
      // Predicated region
      $region9: #{tpu_custom_call.1} parent=5 // pred_check
        _
      $region10: #{tpu_custom_call.1} parent=5 // pred_check_branch
        %137 = sbr.rel (%p134) target = $region12
      $region11: #{tpu_custom_call.1} parent=5 // pred_region
        %s138 = ssub.s32 %s17, 1
      $region12: #{tpu_custom_call.1} parent=5 // pred_fallthru
        _
      %p139 = scmp.lt.s32.totalorder %s17, 2
      // Predicated region
      $region13: #{tpu_custom_call.1} parent=5 // pred_check
        %p140 = pneg %p139
      $region14: #{tpu_custom_call.1} parent=5 // pred_check_branch
        %142 = sbr.rel (%p140) target = $region16
      $region15: #{tpu_custom_call.1} parent=5 // pred_region
        // Predicated region
        $region17: #{tpu_custom_call.1} parent=15 // pred_check
          %p143 = pneg %p60
        $region18: #{tpu_custom_call.1} parent=15 // pred_check_branch
          %145 = sbr.rel (%p143) target = $region20
        $region19: #{tpu_custom_call.1} parent=15 // pred_region
          %s146 = sand.u32 %s50, 1
          %s147 = scalar_lea.sflag [#allocation3], %s146
          %s148 = sand.u32 %s50, 1
          %s149 = smul.addr %s148, 8
          %s150 = scalar_lea.vmem [#allocation2], %s149
          %s151 = sadd.s32 %s25, %s26
          %s153 = ssub.s32 128, 128
          %154 = vsyncadd %s147, %s153
          %s155 = smul.addr %s24, 4
          %s156 = sadd.s32 %s151, %s155
          %s157 = smul.addr %s156, 32
          %s158 = scalar_lea.hbm %s0, %s157
          %s159 = sshll.u32 %s150, 4
          %s160 = int_to_ptr.vmem [resolvable:$true] %s159
          %165 = dma.hbm_to_vmem [thread:$0]  %s158, 128, %s160, %s147, 32, 32, 2
        $region20: #{tpu_custom_call.1} parent=15 // pred_fallthru
          _
        // Predicated region
        $region21: #{tpu_custom_call.1} parent=15 // pred_check
          %p166 = pneg %p90
        $region22: #{tpu_custom_call.1} parent=15 // pred_check_branch
          %168 = sbr.rel (%p166) target = $region24
        $region23: #{tpu_custom_call.1} parent=15 // pred_region
          %s169 = sand.u32 %s80, 1
          %s170 = scalar_lea.sflag [#allocation6], %s169
          %s171 = sand.u32 %s80, 1
          %s172 = smul.addr %s171, 2
          %s173 = scalar_lea.vmem [#allocation5], %s172
          %s174 = sadd.s32 %s25, %s26
          %s176 = ssub.s32 32, 32
          %177 = vsyncadd %s170, %s176
          %s178 = sadd.s32 %s174, %s24
          %s179 = smul.addr %s178, 32
          %s180 = scalar_lea.hbm %s1, %s179
          %s182 = sshll.u32 %s173, 4
          %s183 = int_to_ptr.vmem [resolvable:$true] %s182
          %185 = dma.hbm_to_vmem [thread:$0]  %s180, 32, %s183, %s170
        $region24: #{tpu_custom_call.1} parent=15 // pred_fallthru
          _
      $region16: #{tpu_custom_call.1} parent=5 // pred_fallthru
        _
      %p186 = scmp.le.s32.totalorder 1, %s17
      %p187 = scmp.lt.s32.totalorder %s17, 3
      %p188 = pnand %p186, %p187
      %p189 = pneg %p188
      // Predicated region
      $region25: #{tpu_custom_call.1} parent=5 // pred_check
        _
      $region26: #{tpu_custom_call.1} parent=5 // pred_check_branch
        %191 = sbr.rel (%p188) target = $region28
      $region27: #{tpu_custom_call.1} parent=5 // pred_region
        %s192 = ssub.s32 %s17, 1
        %s193 = sand.u32 %s53, 1
        %s194 = scalar_lea.sflag [#allocation3], %s193
        %s195 = sand.u32 %s53, 1
        %s196 = smul.addr %s195, 8
        %s197 = scalar_lea.vmem [#allocation2], %s196
        // Predicated region
        $region29: #{tpu_custom_call.1} parent=27 // pred_check
          %p198 = pneg %p66
        $region30: #{tpu_custom_call.1} parent=27 // pred_check_branch
          %200 = sbr.rel (%p198) target = $region32
        $region31: #{tpu_custom_call.1} parent=27 // pred_region
          %201 = dma.done %s194, 128
        $region32: #{tpu_custom_call.1} parent=27 // pred_fallthru
          _
        %s202 = sand.u32 %s83, 1
        %s203 = scalar_lea.sflag [#allocation6], %s202
        %s204 = sand.u32 %s83, 1
        %s205 = smul.addr %s204, 2
        %s206 = scalar_lea.vmem [#allocation5], %s205
        // Predicated region
        $region33: #{tpu_custom_call.1} parent=27 // pred_check
          %p207 = pneg %p96
        $region34: #{tpu_custom_call.1} parent=27 // pred_check_branch
          %209 = sbr.rel (%p207) target = $region36
        $region35: #{tpu_custom_call.1} parent=27 // pred_region
          %210 = dma.done %s203, 32
        $region36: #{tpu_custom_call.1} parent=27 // pred_fallthru
          _
        %s211 = sand.u32 %s53, 1
        %s212 = scalar_lea.sflag [#allocation3], %s211
        %s213 = sand.u32 %s53, 1
        %s214 = smul.addr %s213, 8
        %s215 = scalar_lea.vmem [#allocation2], %s214
        %p216 = pneg %p66
        %p217 = pneg %p63
        %s218 = sand.u32 %s83, 1
        %s219 = scalar_lea.sflag [#allocation6], %s218
        %s220 = sand.u32 %s83, 1
        %s221 = smul.addr %s220, 2
        %s222 = scalar_lea.vmem [#allocation5], %s221
        %p223 = pneg %p96
        %p224 = pneg %p93
        %p225 = pneg %p124
        %p226 = pneg %p121
        %s227 = sand.u32 %s111, 1
        %s228 = scalar_lea.sflag [#allocation4], %s227
        %s229 = sand.u32 %s111, 1
        %s230 = smul.addr %s229, 12
        %s231 = scalar_lea.vmem [#allocation7], %s230
        %s232 = sadd.s32 %s28, %s29
        %s233 = sadd.s32 %s28, %s29
        %p234 = scmp.eq.s32.totalorder %s29, 0
        // Predicated region
        $region37: #{tpu_custom_call.1} parent=27 // pred_check
          %p235 = pneg %p234
        $region38: #{tpu_custom_call.1} parent=27 // pred_check_branch
          %237 = sbr.rel (%p235) target = $region40
        $region39: #{tpu_custom_call.1} parent=27 // pred_region
          %238 = vst [vmem:[%s231] sm:$0x3] 0
          %239 = vst [vmem:[%s231 + $0x2] sm:$0x3] 0
          %240 = vst [vmem:[%s231 + $0x4] sm:$0x3] 0
          %241 = vst [vmem:[%s231 + $0x6] sm:$0x3] 0
          %242 = vst [vmem:[%s231 + $0x8] sm:$0x3] 0
          %243 = vst [vmem:[%s231 + $0xa] sm:$0x3] 0
        $region40: #{tpu_custom_call.1} parent=27 // pred_fallthru
          _
        %v244 = vld [vmem:[%s206] sm:$0x3]
        %v245 = vld [vmem:[%s197] sm:$0x3]
        %s246 = scalar_lea.vmem %s197, 2 [#allocation2]
        %v247 = vld [vmem:[%s246] sm:$0x3]
        %vm248 = vcmp.gt.f32.partialorder %v247, %v245
        %v249 = vsel %vm248, 1, 0
        %v250 = vsel %vm248, %v247, %v245
        %s251 = scalar_lea.vmem %s197, 4 [#allocation2]
        %v252 = vld [vmem:[%s251] sm:$0x3]
        %vm253 = vcmp.gt.f32.partialorder %v252, %v250
        %v254 = vsel %vm253, 2, %v249
        %v255 = vsel %vm253, %v252, %v250
        %s256 = scalar_lea.vmem %s197, 6 [#allocation2]
        %v257 = vld [vmem:[%s256] sm:$0x3]
        %vm258 = vcmp.gt.f32.partialorder %v257, %v255
        %v259 = vsel %vm258, 3, %v254
        %vm260 = vcmp.eq.s32.totalorder %v259, %v244
        %vm261 = vcmp.eq.s32.totalorder %v244, 1
        %v262 = vsel %vm261, 1, 0
        %v263 = vsel %vm260, %v262, 0
        %v264 = vld [vmem:[%s231] sm:$0x3]
        %v265 = vadd.s32 %v264, %v263
        %266 = vst [vmem:[%s231] sm:$0x3] %v265
        %s267 = scalar_lea.vmem %s231, 6 [#allocation7]
        %v268 = vld [vmem:[%s267] sm:$0x3]
        %v269 = vadd.s32 %v268, %v262
        %270 = vst [vmem:[%s267] sm:$0x3] %v269
        %vm271 = vcmp.eq.s32.totalorder %v244, 2
        %v272 = vsel %vm271, 1, 0
        %v273 = vsel %vm260, %v272, 0
        %s274 = scalar_lea.vmem %s231, 2 [#allocation7]
        %v275 = vld [vmem:[%s274] sm:$0x3]
        %v276 = vadd.s32 %v275, %v273
        %277 = vst [vmem:[%s274] sm:$0x3] %v276
        %s278 = scalar_lea.vmem %s231, 8 [#allocation7]
        %v279 = vld [vmem:[%s278] sm:$0x3]
        %v280 = vadd.s32 %v279, %v272
        %281 = vst [vmem:[%s278] sm:$0x3] %v280
        %vm282 = vcmp.eq.s32.totalorder %v244, 3
        %v283 = vsel %vm282, 1, 0
        %v284 = vsel %vm260, %v283, 0
        %s285 = scalar_lea.vmem %s231, 4 [#allocation7]
        %v286 = vld [vmem:[%s285] sm:$0x3]
        %v287 = vadd.s32 %v286, %v284
        %288 = vst [vmem:[%s285] sm:$0x3] %v287
        %s289 = scalar_lea.vmem %s231, 10 [#allocation7]
        %v290 = vld [vmem:[%s289] sm:$0x3]
        %v291 = vadd.s32 %v290, %v283
        %292 = vst [vmem:[%s289] sm:$0x3] %v291
        %s293 = sand.u32 %s111, 1
        %s294 = scalar_lea.sflag [#allocation4], %s293
        %s295 = sand.u32 %s111, 1
        %s296 = smul.addr %s295, 12
        %s297 = scalar_lea.vmem [#allocation7], %s296
        // Predicated region
        $region41: #{tpu_custom_call.1} parent=27 // pred_check
          %p298 = pneg %p121
        $region42: #{tpu_custom_call.1} parent=27 // pred_check_branch
          %300 = sbr.rel (%p298) target = $region44
        $region43: #{tpu_custom_call.1} parent=27 // pred_region
          %s302 = ssub.s32 192, 192
          %303 = vsyncadd %s294, %s302
          %s304 = smul.addr %s28, 6
          %s305 = smul.addr %s27, 6
          %s306 = sadd.s32 %s304, %s305
          %s307 = smul.addr %s306, 32
          %s308 = scalar_lea.hbm %s2, %s307
          %s309 = sshll.u32 %s297, 4
          %s310 = int_to_ptr.vmem [resolvable:$true] %s309
          %315 = dma.vmem_to_hbm [thread:$0]  %s310, 192, %s308, %s294, 32, 32, 2
        $region44: #{tpu_custom_call.1} parent=27 // pred_fallthru
          _
      $region28: #{tpu_custom_call.1} parent=5 // pred_fallthru
        _
      %p316 = scmp.le.s32.totalorder 2, %s17
      // Predicated region
      $region45: #{tpu_custom_call.1} parent=5 // pred_check
        %p317 = pneg %p316
      $region46: #{tpu_custom_call.1} parent=5 // pred_check_branch
        %319 = sbr.rel (%p317) target = $region48
      $region47: #{tpu_custom_call.1} parent=5 // pred_region
        %s320 = ssub.s32 %s17, 2
        // Predicated region
        $region49: #{tpu_custom_call.1} parent=47 // pred_check
          %p321 = pneg %p127
        $region50: #{tpu_custom_call.1} parent=47 // pred_check_branch
          %323 = sbr.rel (%p321) target = $region52
        $region51: #{tpu_custom_call.1} parent=47 // pred_region
          %s324 = sand.u32 %s112, 1
          %s325 = scalar_lea.sflag [#allocation4], %s324
          %s326 = sand.u32 %s112, 1
          %s327 = smul.addr %s326, 12
          %s328 = scalar_lea.vmem [#allocation7], %s327
          %329 = dma.done %s325, 192
        $region52: #{tpu_custom_call.1} parent=47 // pred_fallthru
          _
      $region48: #{tpu_custom_call.1} parent=5 // pred_fallthru
        _
    $region6: #{tpu_custom_call.1} parent=1 // loop_footer
      %s21 = sadd.s32 1, %s17
    $region7: #{tpu_custom_call.1} parent=1 // loop_footer_branch
      %16 = sbr.rel target = $region3
    $region8: #{tpu_custom_call.1} parent=1 // loop_exit
      _
    %330 = vsyncpa [#allocation3], 1
    %s331 = scalar_lea.sflag [#allocation3], 1
    %332 = vsyncpa %s331, 1
    %333 = vsyncpa [#allocation6], 1
    %s334 = scalar_lea.sflag [#allocation6], 1
    %335 = vsyncpa %s334, 1
    %336 = vsyncpa [#allocation4], 1
    %s337 = scalar_lea.sflag [#allocation4], 1
    %338 = vsyncpa %s337, 1

</llo_original>
